<compile_context>
chip_gen: v5e
topology: v5e:2x2
jax: 0.10.0
libtpu: 0.0.40
codegen_flags: <defaults>
</compile_context>

<pallas_src>
import jax
import jax.numpy as jnp
import numpy as np
from jax.experimental import pallas as pl
from jax.experimental.pallas import tpu as pltpu

INPUT_DIM = 5      # C_in
KERNEL_SIZE = 2    # K
NUM_KERNELS = 2    # C_out


def _conv1d_kernel(x_ref, w_ref, b_ref, o_ref):
    # x_ref: (Nb, C_in, L)        VMEM   (L on lanes)
    # w_ref: (C_out*C_in*K,)      SMEM   (flat PyTorch weight, row-major)
    # b_ref: (C_out,)             SMEM
    # o_ref: (Nb, C_out, L_out)   VMEM   (L_out on lanes)
    n, c_in, l = x_ref.shape
    _, c_out, l_out = o_ref.shape
    k_size = l - l_out + 1

    x = x_ref[...].astype(jnp.float32)                       # (Nb, C_in, L)

    # Hoisted tap shifts: K lane-axis prefix windows of the WHOLE block
    # (k < 128 so each stays inside one (8,128) tile — cheap value slices).
    taps = [x[:, :, k:k + l_out] for k in range(k_size)]      # K x (Nb, C_in, L_out)

    for o in range(c_out):
        # Init accumulator with the bias (SMEM scalar broadcast).
        acc = jnp.full((n, l_out), b_ref[o], dtype=jnp.float32)
        for k in range(k_size):
            xk = taps[k]                                      # (Nb, C_in, L_out)
            for c in range(c_in):
                w = w_ref[o * (c_in * k_size) + c * k_size + k]   # SMEM scalar
                acc = acc + w * xk[:, c, :]                       # VPU broadcast FMA
        # Direct per-channel store — no stack/relayout.
        o_ref[:, o, :] = acc.astype(o_ref.dtype)


def kernel_filter_forward(x_ncl, weight, bias, *, n_block=16):
    """Conv1d forward (stride=1, no padding), matching nn.Conv1d.

    x_ncl : (N, C_in, L)         float32
    weight: (C_out, C_in, K)     float32   (PyTorch Conv1d weight layout)
    bias  : (C_out,)             float32
    returns (N, C_out, L - K + 1)
    """
    N, C_in, L = x_ncl.shape
    C_out, _, K = weight.shape
    L_out = L - K + 1

    # Flatten params for SMEM (1-D avoids the SMEM 2-D padding blowup).
    w_flat = weight.reshape(-1)          # index = o*(C_in*K) + c*K + k
    b_flat = bias.reshape(C_out)

    out_shape = jax.ShapeDtypeStruct((N, C_out, L_out), x_ncl.dtype)
    smem = pltpu.MemorySpace.SMEM
    vmem = pltpu.MemorySpace.VMEM

    if N % n_block == 0 and N >= 2 * n_block:
        # Batched path: grid over N. n_block is a multiple of 8 (sublane
        # alignment); mark the axis "parallel" so v7x can split the batch
        # across its two TensorCores (no-op on v5e/v6e, harmless).
        grid = (N // n_block,)
        return pl.pallas_call(
            _conv1d_kernel,
            out_shape=out_shape,
            grid=grid,
            in_specs=[
                pl.BlockSpec((n_block, C_in, L), lambda i: (i, 0, 0)),
                pl.BlockSpec(memory_space=smem),    # weights (20 scalars)
                pl.BlockSpec(memory_space=smem),    # bias (2 scalars)
            ],
            out_specs=pl.BlockSpec((n_block, C_out, L_out), lambda i: (i, 0, 0)),
            compiler_params=pltpu.CompilerParams(
                dimension_semantics=("parallel",)),
        )(x_ncl, w_flat, b_flat)

    # Gridless path for tiny N: whole problem in one invocation — wall time
    # is launch + a single DMA; a grid would only add per-step overhead.
    return pl.pallas_call(
        _conv1d_kernel,
        out_shape=out_shape,
        in_specs=[
            pl.BlockSpec(memory_space=vmem),        # x, whole array
            pl.BlockSpec(memory_space=smem),        # weights (20 scalars)
            pl.BlockSpec(memory_space=smem),        # bias (2 scalars)
        ],
        out_specs=pl.BlockSpec(memory_space=vmem),
    )(x_ncl, w_flat, b_flat)


def _conv1d_reference(x, weight, bias):
    # Pure-JAX reference (cross-correlation, matching nn.Conv1d).
    C_out, C_in, K = weight.shape
    L_out = x.shape[-1] - K + 1
    acc = jnp.zeros((x.shape[0], C_out, L_out), jnp.float32)
    for k in range(K):
        acc = acc + jnp.einsum("ncl,oc->nol", x[:, :, k:k + L_out], weight[:, :, k])
    return acc + bias[None, :, None]


if __name__ == "__main__":
    key = jax.random.PRNGKey(0)
    kx, kw, kb, kx2 = jax.random.split(key, 4)

    C_in, C_out, K = INPUT_DIM, NUM_KERNELS, KERNEL_SIZE
    L = 16
    L_out = L - K + 1

    # Deterministic parameter init (PyTorch-style uniform bound 1/sqrt(C_in*K)).
    bound = 1.0 / np.sqrt(C_in * K)
    weight = jax.random.uniform(kw, (C_out, C_in, K), jnp.float32, -bound, bound)
    bias = jax.random.uniform(kb, (C_out,), jnp.float32, -bound, bound)

    # --- Toy size (N=2): gridless path -------------------------------------
    N = 2
    x = jax.random.normal(kx, (N, C_in, L), dtype=jnp.float32)
    out = jax.block_until_ready(kernel_filter_forward(x, weight, bias))
    ref = _conv1d_reference(x, weight, bias)
    assert out.shape == (N, C_out, L_out)
    np.testing.assert_allclose(np.asarray(out), np.asarray(ref), rtol=1e-5, atol=1e-5)

    # --- Batched size (N=64): gridded, parallel-over-N path ----------------
    Nb = 64
    xb = jax.random.normal(kx2, (Nb, C_in, L), dtype=jnp.float32)
    outb = jax.block_until_ready(kernel_filter_forward(xb, weight, bias, n_block=16))
    refb = _conv1d_reference(xb, weight, bias)
    assert outb.shape == (Nb, C_out, L_out)
    np.testing.assert_allclose(np.asarray(outb), np.asarray(refb), rtol=1e-5, atol=1e-5)

    print("KERNEL_OK")
</pallas_src>

<mosaic_0001>
module attributes {stable_mosaic.version = 11 : i64} {
  func.func @_conv1d_kernel(%arg0: memref<2x5x16xf32, #tpu.memory_space<vmem>>, %arg1: memref<20xf32, #tpu.memory_space<smem>>, %arg2: memref<2xf32, #tpu.memory_space<smem>>, %arg3: memref<2x2x15xf32, #tpu.memory_space<vmem>>) attributes {dimension_semantics = [], scalar_prefetch = 0 : i64, scratch_operands = 0 : i64, tpu.core_type = #tpu.core_type<tc>} {
    %c0 = arith.constant 0 : index
    %c0_0 = arith.constant 0 : index
    %c0_1 = arith.constant 0 : index
    %0 = vector.load %arg0[%c0, %c0_0, %c0_1] : memref<2x5x16xf32, #tpu.memory_space<vmem>>, vector<2x5x16xf32>
    %1 = vector.extract_strided_slice %0 {offsets = [0, 0, 0], sizes = [2, 5, 15], strides = [1, 1, 1]} : vector<2x5x16xf32> to vector<2x5x15xf32>
    %2 = vector.extract_strided_slice %0 {offsets = [0, 0, 1], sizes = [2, 5, 15], strides = [1, 1, 1]} : vector<2x5x16xf32> to vector<2x5x15xf32>
    %c0_2 = arith.constant 0 : index
    %3 = memref.load %arg2[%c0_2] : memref<2xf32, #tpu.memory_space<smem>>
    %4 = vector.broadcast %3 : f32 to vector<2x15xf32>
    %c0_3 = arith.constant 0 : index
    %5 = memref.load %arg1[%c0_3] : memref<20xf32, #tpu.memory_space<smem>>
    %6 = vector.extract_strided_slice %1 {offsets = [0, 0, 0], sizes = [2, 1, 15], strides = [1, 1, 1]} : vector<2x5x15xf32> to vector<2x1x15xf32>
    %7 = vector.shape_cast %6 : vector<2x1x15xf32> to vector<2x15xf32>
    %8 = vector.broadcast %5 : f32 to vector<2x15xf32>
    %9 = arith.mulf %8, %7 : vector<2x15xf32>
    %10 = arith.addf %4, %9 : vector<2x15xf32>
    %c2 = arith.constant 2 : index
    %11 = memref.load %arg1[%c2] : memref<20xf32, #tpu.memory_space<smem>>
    %12 = vector.extract_strided_slice %1 {offsets = [0, 1, 0], sizes = [2, 1, 15], strides = [1, 1, 1]} : vector<2x5x15xf32> to vector<2x1x15xf32>
    %13 = vector.shape_cast %12 : vector<2x1x15xf32> to vector<2x15xf32>
    %14 = vector.broadcast %11 : f32 to vector<2x15xf32>
    %15 = arith.mulf %14, %13 : vector<2x15xf32>
    %16 = arith.addf %10, %15 : vector<2x15xf32>
    %c4 = arith.constant 4 : index
    %17 = memref.load %arg1[%c4] : memref<20xf32, #tpu.memory_space<smem>>
    %18 = vector.extract_strided_slice %1 {offsets = [0, 2, 0], sizes = [2, 1, 15], strides = [1, 1, 1]} : vector<2x5x15xf32> to vector<2x1x15xf32>
    %19 = vector.shape_cast %18 : vector<2x1x15xf32> to vector<2x15xf32>
    %20 = vector.broadcast %17 : f32 to vector<2x15xf32>
    %21 = arith.mulf %20, %19 : vector<2x15xf32>
    %22 = arith.addf %16, %21 : vector<2x15xf32>
    %c6 = arith.constant 6 : index
    %23 = memref.load %arg1[%c6] : memref<20xf32, #tpu.memory_space<smem>>
    %24 = vector.extract_strided_slice %1 {offsets = [0, 3, 0], sizes = [2, 1, 15], strides = [1, 1, 1]} : vector<2x5x15xf32> to vector<2x1x15xf32>
    %25 = vector.shape_cast %24 : vector<2x1x15xf32> to vector<2x15xf32>
    %26 = vector.broadcast %23 : f32 to vector<2x15xf32>
    %27 = arith.mulf %26, %25 : vector<2x15xf32>
    %28 = arith.addf %22, %27 : vector<2x15xf32>
    %c8 = arith.constant 8 : index
    %29 = memref.load %arg1[%c8] : memref<20xf32, #tpu.memory_space<smem>>
    %30 = vector.extract_strided_slice %1 {offsets = [0, 4, 0], sizes = [2, 1, 15], strides = [1, 1, 1]} : vector<2x5x15xf32> to vector<2x1x15xf32>
    %31 = vector.shape_cast %30 : vector<2x1x15xf32> to vector<2x15xf32>
    %32 = vector.broadcast %29 : f32 to vector<2x15xf32>
    %33 = arith.mulf %32, %31 : vector<2x15xf32>
    %34 = arith.addf %28, %33 : vector<2x15xf32>
    %c1 = arith.constant 1 : index
    %35 = memref.load %arg1[%c1] : memref<20xf32, #tpu.memory_space<smem>>
    %36 = vector.extract_strided_slice %2 {offsets = [0, 0, 0], sizes = [2, 1, 15], strides = [1, 1, 1]} : vector<2x5x15xf32> to vector<2x1x15xf32>
    %37 = vector.shape_cast %36 : vector<2x1x15xf32> to vector<2x15xf32>
    %38 = vector.broadcast %35 : f32 to vector<2x15xf32>
    %39 = arith.mulf %38, %37 : vector<2x15xf32>
    %40 = arith.addf %34, %39 : vector<2x15xf32>
    %c3 = arith.constant 3 : index
    %41 = memref.load %arg1[%c3] : memref<20xf32, #tpu.memory_space<smem>>
    %42 = vector.extract_strided_slice %2 {offsets = [0, 1, 0], sizes = [2, 1, 15], strides = [1, 1, 1]} : vector<2x5x15xf32> to vector<2x1x15xf32>
    %43 = vector.shape_cast %42 : vector<2x1x15xf32> to vector<2x15xf32>
    %44 = vector.broadcast %41 : f32 to vector<2x15xf32>
    %45 = arith.mulf %44, %43 : vector<2x15xf32>
    %46 = arith.addf %40, %45 : vector<2x15xf32>
    %c5 = arith.constant 5 : index
    %47 = memref.load %arg1[%c5] : memref<20xf32, #tpu.memory_space<smem>>
    %48 = vector.extract_strided_slice %2 {offsets = [0, 2, 0], sizes = [2, 1, 15], strides = [1, 1, 1]} : vector<2x5x15xf32> to vector<2x1x15xf32>
    %49 = vector.shape_cast %48 : vector<2x1x15xf32> to vector<2x15xf32>
    %50 = vector.broadcast %47 : f32 to vector<2x15xf32>
    %51 = arith.mulf %50, %49 : vector<2x15xf32>
    %52 = arith.addf %46, %51 : vector<2x15xf32>
    %c7 = arith.constant 7 : index
    %53 = memref.load %arg1[%c7] : memref<20xf32, #tpu.memory_space<smem>>
    %54 = vector.extract_strided_slice %2 {offsets = [0, 3, 0], sizes = [2, 1, 15], strides = [1, 1, 1]} : vector<2x5x15xf32> to vector<2x1x15xf32>
    %55 = vector.shape_cast %54 : vector<2x1x15xf32> to vector<2x15xf32>
    %56 = vector.broadcast %53 : f32 to vector<2x15xf32>
    %57 = arith.mulf %56, %55 : vector<2x15xf32>
    %58 = arith.addf %52, %57 : vector<2x15xf32>
    %c9 = arith.constant 9 : index
    %59 = memref.load %arg1[%c9] : memref<20xf32, #tpu.memory_space<smem>>
    %60 = vector.extract_strided_slice %2 {offsets = [0, 4, 0], sizes = [2, 1, 15], strides = [1, 1, 1]} : vector<2x5x15xf32> to vector<2x1x15xf32>
    %61 = vector.shape_cast %60 : vector<2x1x15xf32> to vector<2x15xf32>
    %62 = vector.broadcast %59 : f32 to vector<2x15xf32>
    %63 = arith.mulf %62, %61 : vector<2x15xf32>
    %64 = arith.addf %58, %63 : vector<2x15xf32>
    %c0_4 = arith.constant 0 : index
    %c0_5 = arith.constant 0 : index
    %c0_6 = arith.constant 0 : index
    %65 = vector.load %arg3[%c0_4, %c0_5, %c0_6] : memref<2x2x15xf32, #tpu.memory_space<vmem>>, vector<2x1x15xf32>
    %66 = vector.shape_cast %65 : vector<2x1x15xf32> to vector<2x15xf32>
    %67 = vector.shape_cast %64 : vector<2x15xf32> to vector<2x1x15xf32>
    tpu.vector_store %arg3[%c0_4, %c0_5, %c0_6], %67 {strides = array<i32>} : memref<2x2x15xf32, #tpu.memory_space<vmem>>, vector<2x1x15xf32>,
    %c1_7 = arith.constant 1 : index
    %68 = memref.load %arg2[%c1_7] : memref<2xf32, #tpu.memory_space<smem>>
    %69 = vector.broadcast %68 : f32 to vector<2x15xf32>
    %c10 = arith.constant 10 : index
    %70 = memref.load %arg1[%c10] : memref<20xf32, #tpu.memory_space<smem>>
    %71 = vector.extract_strided_slice %1 {offsets = [0, 0, 0], sizes = [2, 1, 15], strides = [1, 1, 1]} : vector<2x5x15xf32> to vector<2x1x15xf32>
    %72 = vector.shape_cast %71 : vector<2x1x15xf32> to vector<2x15xf32>
    %73 = vector.broadcast %70 : f32 to vector<2x15xf32>
    %74 = arith.mulf %73, %72 : vector<2x15xf32>
    %75 = arith.addf %69, %74 : vector<2x15xf32>
    %c12 = arith.constant 12 : index
    %76 = memref.load %arg1[%c12] : memref<20xf32, #tpu.memory_space<smem>>
    %77 = vector.extract_strided_slice %1 {offsets = [0, 1, 0], sizes = [2, 1, 15], strides = [1, 1, 1]} : vector<2x5x15xf32> to vector<2x1x15xf32>
    %78 = vector.shape_cast %77 : vector<2x1x15xf32> to vector<2x15xf32>
    %79 = vector.broadcast %76 : f32 to vector<2x15xf32>
    %80 = arith.mulf %79, %78 : vector<2x15xf32>
    %81 = arith.addf %75, %80 : vector<2x15xf32>
    %c14 = arith.constant 14 : index
    %82 = memref.load %arg1[%c14] : memref<20xf32, #tpu.memory_space<smem>>
    %83 = vector.extract_strided_slice %1 {offsets = [0, 2, 0], sizes = [2, 1, 15], strides = [1, 1, 1]} : vector<2x5x15xf32> to vector<2x1x15xf32>
    %84 = vector.shape_cast %83 : vector<2x1x15xf32> to vector<2x15xf32>
    %85 = vector.broadcast %82 : f32 to vector<2x15xf32>
    %86 = arith.mulf %85, %84 : vector<2x15xf32>
    %87 = arith.addf %81, %86 : vector<2x15xf32>
    %c16 = arith.constant 16 : index
    %88 = memref.load %arg1[%c16] : memref<20xf32, #tpu.memory_space<smem>>
    %89 = vector.extract_strided_slice %1 {offsets = [0, 3, 0], sizes = [2, 1, 15], strides = [1, 1, 1]} : vector<2x5x15xf32> to vector<2x1x15xf32>
    %90 = vector.shape_cast %89 : vector<2x1x15xf32> to vector<2x15xf32>
    %91 = vector.broadcast %88 : f32 to vector<2x15xf32>
    %92 = arith.mulf %91, %90 : vector<2x15xf32>
    %93 = arith.addf %87, %92 : vector<2x15xf32>
    %c18 = arith.constant 18 : index
    %94 = memref.load %arg1[%c18] : memref<20xf32, #tpu.memory_space<smem>>
    %95 = vector.extract_strided_slice %1 {offsets = [0, 4, 0], sizes = [2, 1, 15], strides = [1, 1, 1]} : vector<2x5x15xf32> to vector<2x1x15xf32>
    %96 = vector.shape_cast %95 : vector<2x1x15xf32> to vector<2x15xf32>
    %97 = vector.broadcast %94 : f32 to vector<2x15xf32>
    %98 = arith.mulf %97, %96 : vector<2x15xf32>
    %99 = arith.addf %93, %98 : vector<2x15xf32>
    %c11 = arith.constant 11 : index
    %100 = memref.load %arg1[%c11] : memref<20xf32, #tpu.memory_space<smem>>
    %101 = vector.extract_strided_slice %2 {offsets = [0, 0, 0], sizes = [2, 1, 15], strides = [1, 1, 1]} : vector<2x5x15xf32> to vector<2x1x15xf32>
    %102 = vector.shape_cast %101 : vector<2x1x15xf32> to vector<2x15xf32>
    %103 = vector.broadcast %100 : f32 to vector<2x15xf32>
    %104 = arith.mulf %103, %102 : vector<2x15xf32>
    %105 = arith.addf %99, %104 : vector<2x15xf32>
    %c13 = arith.constant 13 : index
    %106 = memref.load %arg1[%c13] : memref<20xf32, #tpu.memory_space<smem>>
    %107 = vector.extract_strided_slice %2 {offsets = [0, 1, 0], sizes = [2, 1, 15], strides = [1, 1, 1]} : vector<2x5x15xf32> to vector<2x1x15xf32>
    %108 = vector.shape_cast %107 : vector<2x1x15xf32> to vector<2x15xf32>
    %109 = vector.broadcast %106 : f32 to vector<2x15xf32>
    %110 = arith.mulf %109, %108 : vector<2x15xf32>
    %111 = arith.addf %105, %110 : vector<2x15xf32>
    %c15 = arith.constant 15 : index
    %112 = memref.load %arg1[%c15] : memref<20xf32, #tpu.memory_space<smem>>
    %113 = vector.extract_strided_slice %2 {offsets = [0, 2, 0], sizes = [2, 1, 15], strides = [1, 1, 1]} : vector<2x5x15xf32> to vector<2x1x15xf32>
    %114 = vector.shape_cast %113 : vector<2x1x15xf32> to vector<2x15xf32>
    %115 = vector.broadcast %112 : f32 to vector<2x15xf32>
    %116 = arith.mulf %115, %114 : vector<2x15xf32>
    %117 = arith.addf %111, %116 : vector<2x15xf32>
    %c17 = arith.constant 17 : index
    %118 = memref.load %arg1[%c17] : memref<20xf32, #tpu.memory_space<smem>>
    %119 = vector.extract_strided_slice %2 {offsets = [0, 3, 0], sizes = [2, 1, 15], strides = [1, 1, 1]} : vector<2x5x15xf32> to vector<2x1x15xf32>
    %120 = vector.shape_cast %119 : vector<2x1x15xf32> to vector<2x15xf32>
    %121 = vector.broadcast %118 : f32 to vector<2x15xf32>
    %122 = arith.mulf %121, %120 : vector<2x15xf32>
    %123 = arith.addf %117, %122 : vector<2x15xf32>
    %c19 = arith.constant 19 : index
    %124 = memref.load %arg1[%c19] : memref<20xf32, #tpu.memory_space<smem>>
    %125 = vector.extract_strided_slice %2 {offsets = [0, 4, 0], sizes = [2, 1, 15], strides = [1, 1, 1]} : vector<2x5x15xf32> to vector<2x1x15xf32>
    %126 = vector.shape_cast %125 : vector<2x1x15xf32> to vector<2x15xf32>
    %127 = vector.broadcast %124 : f32 to vector<2x15xf32>
    %128 = arith.mulf %127, %126 : vector<2x15xf32>
    %129 = arith.addf %123, %128 : vector<2x15xf32>
    %c0_8 = arith.constant 0 : index
    %c1_9 = arith.constant 1 : index
    %c0_10 = arith.constant 0 : index
    %130 = vector.load %arg3[%c0_8, %c1_9, %c0_10] : memref<2x2x15xf32, #tpu.memory_space<vmem>>, vector<2x1x15xf32>
    %131 = vector.shape_cast %130 : vector<2x1x15xf32> to vector<2x15xf32>
    %132 = vector.shape_cast %129 : vector<2x15xf32> to vector<2x1x15xf32>
    tpu.vector_store %arg3[%c0_8, %c1_9, %c0_10], %132 {strides = array<i32>} : memref<2x2x15xf32, #tpu.memory_space<vmem>>, vector<2x1x15xf32>,
    return
  }
}

</mosaic_0001>

<llo_original>
// kernel: tpu_custom_call.1
$region0: #{tpu_custom_call.1}
  #allocation0 [shape = 'u32[]', space=smem, size = 0x4, offset = 0x4, fixed_abs, tag = 'smem constant byte address 0x4 - core index']
  #allocation1 [shape = 'u32[72,128]{1,0:T(1,128)}', space=vmem, size = 0x9000, scoped, tag = 'internal scratch']
  %s0 = inlined_call_operand.vmem [shape: f32[2,5,16], index: 0, kind: input, shape index: {}]
  %s1 = inlined_call_operand.vmem [shape: f32[20], index: 1, kind: input, shape index: {}]
  %s2 = inlined_call_operand.vmem [shape: f32[2], index: 2, kind: input, shape index: {}]
  %s3 = inlined_call_operand.hbm [shape: f32[2,2,15], index: 3, kind: output, shape index: {}]
  %s4 = sld [smem:[#allocation0]]
  $region30: #{tpu_custom_call.1} parent=0
    _
  %s6 = ssub.s32 1, %s4
  %s7 = scalar_select 0, %s6, %s4
  $region1: #{tpu_custom_call.1} parent=0
    #allocation2 [shape = 'u8[512]{0}', space=smem, size = 0x200, scoped, tag = 'input window, operand 1, single buffered']
    #allocation3 [shape = 's32[1]{0}', space=sflag, size = 0x4, scoped, tag = 'scoped memory for tpu_custom_call.1']
    #allocation4 [shape = 's32[1]{0}', space=sflag, size = 0x4, scoped, tag = 'scoped memory for tpu_custom_call.1']
    #allocation5 [shape = 'u8[512]{0}', space=smem, size = 0x200, scoped, tag = 'input window, operand 2, single buffered']
    #allocation6 [shape = 's32[1]{0}', space=sflag, size = 0x4, scoped, tag = 'scoped memory for tpu_custom_call.1']
    #allocation7 [shape = 'u8[2048]{0}', space=vmem, size = 0x800, scoped, tag = 'output window, operand 0, single buffered']
    %8 = vsyncpa [#allocation4], 0
    %9 = vsyncpa [#allocation6], 0
    %10 = vsyncpa [#allocation3], 0
    // Predicated region
    $region2: #{tpu_custom_call.1} parent=1 // pred_check
      _
    $region3: #{tpu_custom_call.1} parent=1 // pred_check_branch
      %12 = sbr.rel (0) target = $region5
    $region4: #{tpu_custom_call.1} parent=1 // pred_region
      _
    $region5: #{tpu_custom_call.1} parent=1 // pred_fallthru
      _
    // Predicated region
    $region6: #{tpu_custom_call.1} parent=1 // pred_check
      _
    $region7: #{tpu_custom_call.1} parent=1 // pred_check_branch
      %14 = sbr.rel (0) target = $region9
    $region8: #{tpu_custom_call.1} parent=1 // pred_region
      %16 = vsyncadd [#allocation4], 0
      %s18 = sshll.u32 %s1, 4
      %s19 = int_to_ptr.vmem [resolvable:$true] %s18
      %21 = dma.vmem_to_smem %s19, 16, [#allocation2], [#allocation4]
    $region9: #{tpu_custom_call.1} parent=1 // pred_fallthru
      _
    // Predicated region
    $region10: #{tpu_custom_call.1} parent=1 // pred_check
      _
    $region11: #{tpu_custom_call.1} parent=1 // pred_check_branch
      %23 = sbr.rel (0) target = $region13
    $region12: #{tpu_custom_call.1} parent=1 // pred_region
      %25 = vsyncadd [#allocation6], 0
      %s27 = sshll.u32 %s2, 4
      %s28 = int_to_ptr.vmem [resolvable:$true] %s27
      %30 = dma.vmem_to_smem %s28, 16, [#allocation5], [#allocation6]
    $region13: #{tpu_custom_call.1} parent=1 // pred_fallthru
      _
    // Predicated region
    $region14: #{tpu_custom_call.1} parent=1 // pred_check
      _
    $region15: #{tpu_custom_call.1} parent=1 // pred_check_branch
      %32 = sbr.rel (0) target = $region17
    $region16: #{tpu_custom_call.1} parent=1 // pred_region
      %34 = dma.done [#allocation4], 16
    $region17: #{tpu_custom_call.1} parent=1 // pred_fallthru
      _
    // Predicated region
    $region18: #{tpu_custom_call.1} parent=1 // pred_check
      _
    $region19: #{tpu_custom_call.1} parent=1 // pred_check_branch
      %36 = sbr.rel (0) target = $region21
    $region20: #{tpu_custom_call.1} parent=1 // pred_region
      %38 = dma.done [#allocation6], 16
    $region21: #{tpu_custom_call.1} parent=1 // pred_fallthru
      _
    %39 = sfence
    %v40 = vld [vmem:[%s0] sm:$0x1f]
    %v41 = vld [vmem:[%s0 + $0x8] sm:$0x1f]
    %s42 = sld [smem:[#allocation5]]
    %v43 = vstv %s42
    %s44 = sld [smem:[#allocation2]]
    %v45 = vstv %s44
    %v46 = vmul.f32 %v45, %v40
    %v47 = vmul.f32 %v45, %v41
    %v48 = vadd.f32 %v43, %v46
    %v49 = vadd.f32 %v43, %v47
    %s50 = sld [smem:[#allocation2 + $0x2]]
    %v51 = vstv %s50
    %v52 = vmul.f32 %v51, %v40
    %v53 = vmul.f32 %v51, %v41
    %v56 = vrot.slane %v52, 1
    %v57 = vrot.slane %v53, 1
    %v60 = vadd.f32 %v48, %v56
    %v61 = vadd.f32 %v49, %v57
    %s62 = sld [smem:[#allocation2 + $0x4]]
    %v63 = vstv %s62
    %v64 = vmul.f32 %v63, %v40
    %v65 = vmul.f32 %v63, %v41
    %v68 = vrot.slane %v64, 2
    %v69 = vrot.slane %v65, 2
    %v72 = vadd.f32 %v60, %v68
    %v73 = vadd.f32 %v61, %v69
    %s74 = sld [smem:[#allocation2 + $0x6]]
    %v75 = vstv %s74
    %v76 = vmul.f32 %v75, %v40
    %v77 = vmul.f32 %v75, %v41
    %v80 = vrot.slane %v76, 3
    %v81 = vrot.slane %v77, 3
    %v84 = vadd.f32 %v72, %v80
    %v85 = vadd.f32 %v73, %v81
    %s86 = sld [smem:[#allocation2 + $0x8]]
    %v87 = vstv %s86
    %v88 = vmul.f32 %v87, %v40
    %v89 = vmul.f32 %v87, %v41
    %v92 = vrot.slane %v88, 4
    %v93 = vrot.slane %v89, 4
    %v96 = vadd.f32 %v84, %v92
    %v97 = vadd.f32 %v85, %v93
    %s98 = sld [smem:[#allocation2 + $0x1]]
    %v99 = vstv %s98
    %v100 = vmul.f32 %v99, %v40
    %v101 = vmul.f32 %v99, %v41
    %104 = vrot.lane.b32.xlu0 %v100, 127
    %v105 = vpop.permute.xlu0 %104
    %106 = vrot.lane.b32.xlu0 %v101, 127
    %v107 = vpop.permute.xlu0 %106
    %v110 = vadd.f32 %v96, %v105
    %v111 = vadd.f32 %v97, %v107
    %s112 = sld [smem:[#allocation2 + $0x3]]
    %v113 = vstv %s112
    %v114 = vmul.f32 %v113, %v40
    %v115 = vmul.f32 %v113, %v41
    %v118 = vrot.slane %v114, 1
    %v119 = vrot.slane %v115, 1
    %120 = vrot.lane.b32.xlu0 %v118, 127
    %v121 = vpop.permute.xlu0 %120
    %122 = vrot.lane.b32.xlu0 %v119, 127
    %v123 = vpop.permute.xlu0 %122
    %v126 = vadd.f32 %v110, %v121
    %v127 = vadd.f32 %v111, %v123
    %s128 = sld [smem:[#allocation2 + $0x5]]
    %v129 = vstv %s128
    %v130 = vmul.f32 %v129, %v40
    %v131 = vmul.f32 %v129, %v41
    %v134 = vrot.slane %v130, 2
    %v135 = vrot.slane %v131, 2
    %136 = vrot.lane.b32.xlu0 %v134, 127
    %v137 = vpop.permute.xlu0 %136
    %138 = vrot.lane.b32.xlu0 %v135, 127
    %v139 = vpop.permute.xlu0 %138
    %v142 = vadd.f32 %v126, %v137
    %v143 = vadd.f32 %v127, %v139
    %s144 = sld [smem:[#allocation2 + $0x7]]
    %v145 = vstv %s144
    %v146 = vmul.f32 %v145, %v40
    %v147 = vmul.f32 %v145, %v41
    %v150 = vrot.slane %v146, 3
    %v151 = vrot.slane %v147, 3
    %152 = vrot.lane.b32.xlu0 %v150, 127
    %v153 = vpop.permute.xlu0 %152
    %154 = vrot.lane.b32.xlu0 %v151, 127
    %v155 = vpop.permute.xlu0 %154
    %v158 = vadd.f32 %v142, %v153
    %v159 = vadd.f32 %v143, %v155
    %s160 = sld [smem:[#allocation2 + $0x9]]
    %v161 = vstv %s160
    %v162 = vmul.f32 %v161, %v40
    %v163 = vmul.f32 %v161, %v41
    %v166 = vrot.slane %v162, 4
    %v167 = vrot.slane %v163, 4
    %168 = vrot.lane.b32.xlu0 %v166, 127
    %v169 = vpop.permute.xlu0 %168
    %170 = vrot.lane.b32.xlu0 %v167, 127
    %v171 = vpop.permute.xlu0 %170
    %v174 = vadd.f32 %v158, %v169
    %v175 = vadd.f32 %v159, %v171
    %vm176 = vcmask 114688
    %177 = vst.msk [vmem:[#allocation7] sm:$0x1] %vm176, %v174
    %178 = vst.msk [vmem:[#allocation7 + $0x2] sm:$0x1] %vm176, %v175
    %s179 = sld [smem:[#allocation5 + $0x1]]
    %v180 = vstv %s179
    %s181 = sld [smem:[#allocation2 + $0xa]]
    %v182 = vstv %s181
    %v183 = vmul.f32 %v182, %v40
    %v184 = vmul.f32 %v182, %v41
    %v185 = vadd.f32 %v180, %v183
    %v186 = vadd.f32 %v180, %v184
    %s187 = sld [smem:[#allocation2 + $0xc]]
    %v188 = vstv %s187
    %v189 = vmul.f32 %v188, %v40
    %v190 = vmul.f32 %v188, %v41
    %v193 = vrot.slane %v189, 1
    %v194 = vrot.slane %v190, 1
    %v197 = vadd.f32 %v185, %v193
    %v198 = vadd.f32 %v186, %v194
    %s199 = sld [smem:[#allocation2 + $0xe]]
    %v200 = vstv %s199
    %v201 = vmul.f32 %v200, %v40
    %v202 = vmul.f32 %v200, %v41
    %v205 = vrot.slane %v201, 2
    %v206 = vrot.slane %v202, 2
    %v209 = vadd.f32 %v197, %v205
    %v210 = vadd.f32 %v198, %v206
    %s211 = sld [smem:[#allocation2 + $0x10]]
    %v212 = vstv %s211
    %v213 = vmul.f32 %v212, %v40
    %v214 = vmul.f32 %v212, %v41
    %v217 = vrot.slane %v213, 3
    %v218 = vrot.slane %v214, 3
    %v221 = vadd.f32 %v209, %v217
    %v222 = vadd.f32 %v210, %v218
    %s223 = sld [smem:[#allocation2 + $0x12]]
    %v224 = vstv %s223
    %v225 = vmul.f32 %v224, %v40
    %v226 = vmul.f32 %v224, %v41
    %v229 = vrot.slane %v225, 4
    %v230 = vrot.slane %v226, 4
    %v233 = vadd.f32 %v221, %v229
    %v234 = vadd.f32 %v222, %v230
    %s235 = sld [smem:[#allocation2 + $0xb]]
    %v236 = vstv %s235
    %v237 = vmul.f32 %v236, %v40
    %v238 = vmul.f32 %v236, %v41
    %241 = vrot.lane.b32.xlu0 %v237, 127
    %v242 = vpop.permute.xlu0 %241
    %243 = vrot.lane.b32.xlu0 %v238, 127
    %v244 = vpop.permute.xlu0 %243
    %v247 = vadd.f32 %v233, %v242
    %v248 = vadd.f32 %v234, %v244
    %s249 = sld [smem:[#allocation2 + $0xd]]
    %v250 = vstv %s249
    %v251 = vmul.f32 %v250, %v40
    %v252 = vmul.f32 %v250, %v41
    %v255 = vrot.slane %v251, 1
    %v256 = vrot.slane %v252, 1
    %257 = vrot.lane.b32.xlu0 %v255, 127
    %v258 = vpop.permute.xlu0 %257
    %259 = vrot.lane.b32.xlu0 %v256, 127
    %v260 = vpop.permute.xlu0 %259
    %v263 = vadd.f32 %v247, %v258
    %v264 = vadd.f32 %v248, %v260
    %s265 = sld [smem:[#allocation2 + $0xf]]
    %v266 = vstv %s265
    %v267 = vmul.f32 %v266, %v40
    %v268 = vmul.f32 %v266, %v41
    %v271 = vrot.slane %v267, 2
    %v272 = vrot.slane %v268, 2
    %273 = vrot.lane.b32.xlu0 %v271, 127
    %v274 = vpop.permute.xlu0 %273
    %275 = vrot.lane.b32.xlu0 %v272, 127
    %v276 = vpop.permute.xlu0 %275
    %v279 = vadd.f32 %v263, %v274
    %v280 = vadd.f32 %v264, %v276
    %s281 = sld [smem:[#allocation2 + $0x11]]
    %v282 = vstv %s281
    %v283 = vmul.f32 %v282, %v40
    %v284 = vmul.f32 %v282, %v41
    %v287 = vrot.slane %v283, 3
    %v288 = vrot.slane %v284, 3
    %289 = vrot.lane.b32.xlu0 %v287, 127
    %v290 = vpop.permute.xlu0 %289
    %291 = vrot.lane.b32.xlu0 %v288, 127
    %v292 = vpop.permute.xlu0 %291
    %v295 = vadd.f32 %v279, %v290
    %v296 = vadd.f32 %v280, %v292
    %s297 = sld [smem:[#allocation2 + $0x13]]
    %v298 = vstv %s297
    %v299 = vmul.f32 %v298, %v40
    %v300 = vmul.f32 %v298, %v41
    %v303 = vrot.slane %v299, 4
    %v304 = vrot.slane %v300, 4
    %305 = vrot.lane.b32.xlu0 %v303, 127
    %v306 = vpop.permute.xlu0 %305
    %307 = vrot.lane.b32.xlu0 %v304, 127
    %v308 = vpop.permute.xlu0 %307
    %v311 = vadd.f32 %v295, %v306
    %v312 = vadd.f32 %v296, %v308
    %313 = vst.msk [vmem:[#allocation7 + $0x1] sm:$0x1] %vm176, %v311
    %314 = vst.msk [vmem:[#allocation7 + $0x3] sm:$0x1] %vm176, %v312
    // Predicated region
    $region22: #{tpu_custom_call.1} parent=1 // pred_check
      _
    $region23: #{tpu_custom_call.1} parent=1 // pred_check_branch
      %316 = sbr.rel (0) target = $region25
    $region24: #{tpu_custom_call.1} parent=1 // pred_region
      %318 = vsyncadd [#allocation3], 0
      %s319 = sshll.u32 [#allocation7], 4
      %s320 = int_to_ptr.vmem [resolvable:$true] %s319
      %s321 = sshll.u32 %s3, 4
      %s322 = int_to_ptr.hbm [resolvable:$true] %s321
      %327 = dma.vmem_to_hbm [thread:$0]  %s320, 64, %s322, [#allocation3], 32, 32, 2
    $region25: #{tpu_custom_call.1} parent=1 // pred_fallthru
      _
    // Predicated region
    $region26: #{tpu_custom_call.1} parent=1 // pred_check
      _
    $region27: #{tpu_custom_call.1} parent=1 // pred_check_branch
      %329 = sbr.rel (0) target = $region29
    $region28: #{tpu_custom_call.1} parent=1 // pred_region
      %331 = dma.done [#allocation3], 64
    $region29: #{tpu_custom_call.1} parent=1 // pred_fallthru
      _
    %332 = vsyncpa [#allocation3], 1
    %333 = vsyncpa [#allocation4], 1
    %334 = vsyncpa [#allocation6], 1

</llo_original>
